<compile_context>
chip_gen: v7x
topology: tpu7x:2x2x1
jax: 0.10.0
libtpu: 0.0.40
codegen_flags: <defaults>
</compile_context>

<pallas_src>
import jax
import jax.numpy as jnp
from jax.experimental import pallas as pl
from jax.experimental.pallas import tpu as pltpu


def _round_up(n, m):
    return ((n + m - 1) // m) * m


def _mlp_kernel(xt_ref,
                w1t_ref, b1_ref,
                w2t_ref, b2_ref,
                w3t_ref, b3_ref,
                w4c_ref, b4_ref,
                o_ref):
    # Activations are (features, TB): lane dim = batch, always 128-dense.
    xt = xt_ref[...]                                                      # (10, TB) bf16

    h1 = jnp.dot(w1t_ref[...], xt, preferred_element_type=jnp.float32)   # (128, TB)
    h1 = jnp.maximum(h1 + b1_ref[...], 0.0).astype(jnp.bfloat16)

    h2 = jnp.dot(w2t_ref[...], h1, preferred_element_type=jnp.float32)   # (64, TB)
    h2 = jnp.maximum(h2 + b2_ref[...], 0.0).astype(jnp.bfloat16)

    h3 = jnp.dot(w3t_ref[...], h2, preferred_element_type=jnp.float32)   # (32, TB)
    h3 = jnp.maximum(h3 + b3_ref[...], 0.0)                              # f32

    # fc4 (single output feature): VPU multiply + sublane reduction in f32
    # instead of a wasted N=1 MXU pass; result is already a lane-dense row.
    h4 = jnp.sum(h3 * w4c_ref[...], axis=0, keepdims=True)               # (1, TB)
    o_ref[...] = (h4 + b4_ref[0, 0]).astype(o_ref.dtype)


def berg_climate_nn_forward(x, params, tb_max=2048):
    """x: (B, 10) float32. params: w1..w4 as (in, out), b1..b4 as (out,)."""
    B, F = x.shape
    assert F == 10, F

    # Batch tile: multiple of 128 (lane-dense), capped at tb_max, and sized so
    # the grid has >= 2 tiles when the batch allows (v7x two-TensorCore sharding).
    TB = min(_round_up(tb_max, 128),
             max(128, _round_up(-(-B // 2), 128)))
    B_pad = _round_up(max(B, 1), TB)
    G = B_pad // TB

    # One fused wrapper op: batch-on-lanes transpose + bf16 cast + ragged-tail pad.
    xt = x.T.astype(jnp.bfloat16)                    # (10, B)
    if B_pad != B:
        xt = jnp.pad(xt, ((0, 0), (0, B_pad - B)))   # (10, B_pad)

    # Hoisted one-time layout fixes (static w.r.t. the grid loop).
    w1t = params["w1"].T.astype(jnp.bfloat16)        # (128, 10)
    w2t = params["w2"].T.astype(jnp.bfloat16)        # (64, 128)
    w3t = params["w3"].T.astype(jnp.bfloat16)        # (32, 64)
    w4c = params["w4"].reshape(32, 1)                # (32, 1)  f32 (VPU path)
    b1 = params["b1"].reshape(128, 1)
    b2 = params["b2"].reshape(64, 1)
    b3 = params["b3"].reshape(32, 1)
    b4 = params["b4"].reshape(1, 1)                  # scalar -> SMEM

    const = lambda i: (0, 0)                         # weights/biases: VMEM-resident
    in_specs = [
        pl.BlockSpec((10, TB), lambda i: (0, i)),    # x^T: streams over batch lanes
        pl.BlockSpec((128, 10), const),              # w1^T
        pl.BlockSpec((128, 1), const),               # b1
        pl.BlockSpec((64, 128), const),              # w2^T
        pl.BlockSpec((64, 1), const),                # b2
        pl.BlockSpec((32, 64), const),               # w3^T
        pl.BlockSpec((32, 1), const),                # b3
        pl.BlockSpec((32, 1), const),                # w4 column
        pl.BlockSpec(memory_space=pltpu.MemorySpace.SMEM),  # b4 scalar
    ]
    out_specs = pl.BlockSpec((1, TB), lambda i: (0, i))

    out = pl.pallas_call(
        _mlp_kernel,
        out_shape=jax.ShapeDtypeStruct((1, B_pad), jnp.float32),
        grid=(G,),
        in_specs=in_specs,
        out_specs=out_specs,
        compiler_params=pltpu.CompilerParams(
            dimension_semantics=("parallel",)),
    )(xt, w1t, b1, w2t, b2, w3t, b3, w4c, b4)

    # Lane-dense (1, B_pad) row back to (B, 1); drop padded columns.
    return out[0, :B].reshape(B, 1)


def init_params(key):
    """Mimics PyTorch nn.Linear default init U(-1/sqrt(fan_in), 1/sqrt(fan_in))."""
    dims = [(10, 128), (128, 64), (64, 32), (32, 1)]
    params = {}
    for i, (fan_in, fan_out) in enumerate(dims, start=1):
        key, kw, kb = jax.random.split(key, 3)
        bound = 1.0 / (fan_in ** 0.5)
        params[f"w{i}"] = jax.random.uniform(
            kw, (fan_in, fan_out), jnp.float32, minval=-bound, maxval=bound)
        params[f"b{i}"] = jax.random.uniform(
            kb, (fan_out,), jnp.float32, minval=-bound, maxval=bound)
    return params


def reference_forward_f32(x, params):
    h = jnp.maximum(x @ params["w1"] + params["b1"], 0.0)
    h = jnp.maximum(h @ params["w2"] + params["b2"], 0.0)
    h = jnp.maximum(h @ params["w3"] + params["b3"], 0.0)
    return h @ params["w4"] + params["b4"]


def reference_forward_bf16(x, params):
    """Matches the kernel's numerics: bf16 MXU operands, f32 accumulation."""
    bf = jnp.bfloat16
    f32 = jnp.float32
    h = jnp.dot(x.astype(bf), params["w1"].astype(bf), preferred_element_type=f32)
    h = jnp.maximum(h + params["b1"], 0.0)
    h = jnp.dot(h.astype(bf), params["w2"].astype(bf), preferred_element_type=f32)
    h = jnp.maximum(h + params["b2"], 0.0)
    h = jnp.dot(h.astype(bf), params["w3"].astype(bf), preferred_element_type=f32)
    h = jnp.maximum(h + params["b3"], 0.0)
    return h @ params["w4"] + params["b4"]


if __name__ == "__main__":
    key = jax.random.PRNGKey(0)
    key, kx1, kx2 = jax.random.split(key, 3)
    params = init_params(key)

    # Case 1: small batch (single 128-row tile after padding), default tb_max.
    B1 = 8
    x1 = jax.random.normal(kx1, (B1, 10), jnp.float32)
    out1 = jax.block_until_ready(berg_climate_nn_forward(x1, params))
    assert out1.shape == (B1, 1), out1.shape
    assert jnp.allclose(out1, reference_forward_bf16(x1, params), atol=2e-3, rtol=2e-3)
    assert jnp.allclose(out1, reference_forward_f32(x1, params), atol=5e-2, rtol=5e-2)

    # Case 2: multiple grid tiles (G=2) with a padded partial last block.
    B2 = 300
    x2 = jax.random.normal(kx2, (B2, 10), jnp.float32)
    out2 = jax.block_until_ready(berg_climate_nn_forward(x2, params, tb_max=256))
    assert out2.shape == (B2, 1), out2.shape
    assert jnp.allclose(out2, reference_forward_bf16(x2, params), atol=2e-3, rtol=2e-3)
    assert jnp.allclose(out2, reference_forward_f32(x2, params), atol=5e-2, rtol=5e-2)

    print("KERNEL_OK")
</pallas_src>

<mosaic_0001>
module attributes {stable_mosaic.version = 11 : i64} {
  func.func @_mlp_kernel(%arg0: i32, %arg1: memref<10x128xbf16, #tpu.memory_space<vmem>>, %arg2: memref<128x10xbf16, #tpu.memory_space<vmem>>, %arg3: memref<128x1xf32, #tpu.memory_space<vmem>>, %arg4: memref<64x128xbf16, #tpu.memory_space<vmem>>, %arg5: memref<64x1xf32, #tpu.memory_space<vmem>>, %arg6: memref<32x64xbf16, #tpu.memory_space<vmem>>, %arg7: memref<32x1xf32, #tpu.memory_space<vmem>>, %arg8: memref<32x1xf32, #tpu.memory_space<vmem>>, %arg9: memref<1x1xf32, #tpu.memory_space<smem>>, %arg10: memref<1x128xf32, #tpu.memory_space<vmem>>) attributes {dimension_semantics = [#tpu.dimension_semantics<parallel>], iteration_bounds = array<i64: 1>, scalar_prefetch = 0 : i64, scratch_operands = 0 : i64, tpu.core_type = #tpu.core_type<tc>, window_params = [{transform_indices = @transform_0, window_bounds = array<i64: 10, 128>}, {pipeline_mode = #tpu.pipeline_mode<synchronous>, transform_indices = @transform_1, window_bounds = array<i64: 128, 10>}, {pipeline_mode = #tpu.pipeline_mode<synchronous>, transform_indices = @transform_2, window_bounds = array<i64: 128, 1>}, {pipeline_mode = #tpu.pipeline_mode<synchronous>, transform_indices = @transform_3, window_bounds = array<i64: 64, 128>}, {pipeline_mode = #tpu.pipeline_mode<synchronous>, transform_indices = @transform_4, window_bounds = array<i64: 64, 1>}, {pipeline_mode = #tpu.pipeline_mode<synchronous>, transform_indices = @transform_5, window_bounds = array<i64: 32, 64>}, {pipeline_mode = #tpu.pipeline_mode<synchronous>, transform_indices = @transform_6, window_bounds = array<i64: 32, 1>}, {pipeline_mode = #tpu.pipeline_mode<synchronous>, transform_indices = @transform_7, window_bounds = array<i64: 32, 1>}, {transform_indices = @transform_8, window_bounds = array<i64: 1, 1>}, {transform_indices = @transform_9, window_bounds = array<i64: 1, 128>}]} {
    %c0 = arith.constant 0 : index
    %c0_0 = arith.constant 0 : index
    %0 = vector.load %arg1[%c0, %c0_0] : memref<10x128xbf16, #tpu.memory_space<vmem>>, vector<10x128xbf16>
    %c0_1 = arith.constant 0 : index
    %c0_2 = arith.constant 0 : index
    %1 = vector.load %arg2[%c0_1, %c0_2] : memref<128x10xbf16, #tpu.memory_space<vmem>>, vector<128x10xbf16>
    %cst = arith.constant dense<0.000000e+00> : vector<128x128xf32>
    %2 = tpu.matmul %1, %0, %cst {dimension_numbers = #tpu.dot_dimension_numbers<[1], [0], [0], [1], [0, 0, 1, 1], [], []>} : vector<128x10xbf16>, vector<10x128xbf16>, vector<128x128xf32> -> vector<128x128xf32>
    %c0_3 = arith.constant 0 : index
    %c0_4 = arith.constant 0 : index
    %3 = vector.load %arg3[%c0_3, %c0_4] : memref<128x1xf32, #tpu.memory_space<vmem>>, vector<128x1xf32>
    %4 = vector.broadcast %3 : vector<128x1xf32> to vector<128x128xf32>
    %5 = arith.addf %2, %4 : vector<128x128xf32>
    %cst_5 = arith.constant 0.000000e+00 : f32
    %6 = vector.broadcast %cst_5 : f32 to vector<128x128xf32>
    %7 = arith.maximumf %5, %6 : vector<128x128xf32>
    %8 = arith.truncf %7 : vector<128x128xf32> to vector<128x128xbf16>
    %c0_6 = arith.constant 0 : index
    %c0_7 = arith.constant 0 : index
    %9 = vector.load %arg4[%c0_6, %c0_7] : memref<64x128xbf16, #tpu.memory_space<vmem>>, vector<64x128xbf16>
    %cst_8 = arith.constant dense<0.000000e+00> : vector<64x128xf32>
    %10 = tpu.matmul %9, %8, %cst_8 {dimension_numbers = #tpu.dot_dimension_numbers<[1], [0], [0], [1], [0, 0, 1, 1], [], []>} : vector<64x128xbf16>, vector<128x128xbf16>, vector<64x128xf32> -> vector<64x128xf32>
    %c0_9 = arith.constant 0 : index
    %c0_10 = arith.constant 0 : index
    %11 = vector.load %arg5[%c0_9, %c0_10] : memref<64x1xf32, #tpu.memory_space<vmem>>, vector<64x1xf32>
    %12 = vector.broadcast %11 : vector<64x1xf32> to vector<64x128xf32>
    %13 = arith.addf %10, %12 : vector<64x128xf32>
    %cst_11 = arith.constant 0.000000e+00 : f32
    %14 = vector.broadcast %cst_11 : f32 to vector<64x128xf32>
    %15 = arith.maximumf %13, %14 : vector<64x128xf32>
    %16 = arith.truncf %15 : vector<64x128xf32> to vector<64x128xbf16>
    %c0_12 = arith.constant 0 : index
    %c0_13 = arith.constant 0 : index
    %17 = vector.load %arg6[%c0_12, %c0_13] : memref<32x64xbf16, #tpu.memory_space<vmem>>, vector<32x64xbf16>
    %cst_14 = arith.constant dense<0.000000e+00> : vector<32x128xf32>
    %18 = tpu.matmul %17, %16, %cst_14 {dimension_numbers = #tpu.dot_dimension_numbers<[1], [0], [0], [1], [0, 0, 1, 1], [], []>} : vector<32x64xbf16>, vector<64x128xbf16>, vector<32x128xf32> -> vector<32x128xf32>
    %c0_15 = arith.constant 0 : index
    %c0_16 = arith.constant 0 : index
    %19 = vector.load %arg7[%c0_15, %c0_16] : memref<32x1xf32, #tpu.memory_space<vmem>>, vector<32x1xf32>
    %20 = vector.broadcast %19 : vector<32x1xf32> to vector<32x128xf32>
    %21 = arith.addf %18, %20 : vector<32x128xf32>
    %cst_17 = arith.constant 0.000000e+00 : f32
    %22 = vector.broadcast %cst_17 : f32 to vector<32x128xf32>
    %23 = arith.maximumf %21, %22 : vector<32x128xf32>
    %c0_18 = arith.constant 0 : index
    %c0_19 = arith.constant 0 : index
    %24 = vector.load %arg8[%c0_18, %c0_19] : memref<32x1xf32, #tpu.memory_space<vmem>>, vector<32x1xf32>
    %25 = vector.broadcast %24 : vector<32x1xf32> to vector<32x128xf32>
    %26 = arith.mulf %23, %25 : vector<32x128xf32>
    %cst_20 = arith.constant dense<0.000000e+00> : vector<128xf32>
    %27 = vector.multi_reduction <add>, %26, %cst_20 [0] : vector<32x128xf32> to vector<128xf32>
    %28 = vector.shape_cast %27 : vector<128xf32> to vector<1x128xf32>
    %c0_21 = arith.constant 0 : index
    %c0_22 = arith.constant 0 : index
    %29 = memref.load %arg9[%c0_21, %c0_22] : memref<1x1xf32, #tpu.memory_space<smem>>
    %30 = vector.broadcast %29 : f32 to vector<1x128xf32>
    %31 = arith.addf %28, %30 : vector<1x128xf32>
    %c0_23 = arith.constant 0 : index
    %c0_24 = arith.constant 0 : index
    %32 = vector.load %arg10[%c0_23, %c0_24] : memref<1x128xf32, #tpu.memory_space<vmem>>, vector<1x128xf32>
    tpu.vector_store %arg10[%c0_23, %c0_24], %31 {strides = array<i32>} : memref<1x128xf32, #tpu.memory_space<vmem>>, vector<1x128xf32>,
    return
  }
  func.func @transform_0(%arg0: i32) -> (i32, i32) {
    %c0_i32 = arith.constant 0 : i32
    %c0_i32_0 = arith.constant 0 : i32
    return %c0_i32, %arg0 : i32, i32
  }
  func.func @transform_1(%arg0: i32) -> (i32, i32) {
    %c0_i32 = arith.constant 0 : i32
    %c0_i32_0 = arith.constant 0 : i32
    %c0_i32_1 = arith.constant 0 : i32
    return %c0_i32, %c0_i32_0 : i32, i32
  }
  func.func @transform_2(%arg0: i32) -> (i32, i32) {
    %c0_i32 = arith.constant 0 : i32
    %c0_i32_0 = arith.constant 0 : i32
    %c0_i32_1 = arith.constant 0 : i32
    return %c0_i32, %c0_i32_0 : i32, i32
  }
  func.func @transform_3(%arg0: i32) -> (i32, i32) {
    %c0_i32 = arith.constant 0 : i32
    %c0_i32_0 = arith.constant 0 : i32
    %c0_i32_1 = arith.constant 0 : i32
    return %c0_i32, %c0_i32_0 : i32, i32
  }
  func.func @transform_4(%arg0: i32) -> (i32, i32) {
    %c0_i32 = arith.constant 0 : i32
    %c0_i32_0 = arith.constant 0 : i32
    %c0_i32_1 = arith.constant 0 : i32
    return %c0_i32, %c0_i32_0 : i32, i32
  }
  func.func @transform_5(%arg0: i32) -> (i32, i32) {
    %c0_i32 = arith.constant 0 : i32
    %c0_i32_0 = arith.constant 0 : i32
    %c0_i32_1 = arith.constant 0 : i32
    return %c0_i32, %c0_i32_0 : i32, i32
  }
  func.func @transform_6(%arg0: i32) -> (i32, i32) {
    %c0_i32 = arith.constant 0 : i32
    %c0_i32_0 = arith.constant 0 : i32
    %c0_i32_1 = arith.constant 0 : i32
    return %c0_i32, %c0_i32_0 : i32, i32
  }
  func.func @transform_7(%arg0: i32) -> (i32, i32) {
    %c0_i32 = arith.constant 0 : i32
    %c0_i32_0 = arith.constant 0 : i32
    %c0_i32_1 = arith.constant 0 : i32
    return %c0_i32, %c0_i32_0 : i32, i32
  }
  func.func @transform_8(%arg0: i32) -> (i32, i32) {
    %c0_i32 = arith.constant 0 : i32
    %c0_i32_0 = arith.constant 0 : i32
    %c0_i32_1 = arith.constant 0 : i32
    return %c0_i32, %c0_i32_0 : i32, i32
  }
  func.func @transform_9(%arg0: i32) -> (i32, i32) {
    %c0_i32 = arith.constant 0 : i32
    %c0_i32_0 = arith.constant 0 : i32
    return %c0_i32, %arg0 : i32, i32
  }
}

</mosaic_0001>

<llo_original>
// kernel: tpu_custom_call.1
$region0: #{tpu_custom_call.1}
  #allocation0 [shape = 'u32[]', space=smem, size = 0x4, offset = 0x4, fixed_abs, tag = 'smem constant byte address 0x4 - core index']
  #allocation1 [shape = 'u32[144,128]{1,0:T(1,128)}', space=vmem, size = 0x12000, scoped, tag = 'internal scratch']
  #allocation2 [shape = 'f32[1,1]{1,0:T(1,128)S(6)}', space=smem, size = 0x200, scoped, tag = 'scoped memory for tpu_custom_call.1']
  %s0 = inlined_call_operand.vmem [shape: bf16[10,128], index: 0, kind: input, shape index: {}]
  %s1 = inlined_call_operand.vmem [shape: bf16[128,10], index: 1, kind: input, shape index: {}]
  %s2 = inlined_call_operand.vmem [shape: f32[128,1], index: 2, kind: input, shape index: {}]
  %s3 = inlined_call_operand.vmem [shape: bf16[64,128], index: 3, kind: input, shape index: {}]
  %s4 = inlined_call_operand.vmem [shape: f32[64,1], index: 4, kind: input, shape index: {}]
  %s5 = inlined_call_operand.vmem [shape: bf16[32,64], index: 5, kind: input, shape index: {}]
  %s6 = inlined_call_operand.vmem [shape: f32[32,1], index: 6, kind: input, shape index: {}]
  %s7 = inlined_call_operand.vmem [shape: f32[32,1], index: 7, kind: input, shape index: {}]
  %s8 = inlined_call_operand.<no memory space> [shape: f32[1,1], index: 8, kind: input, shape index: {}]
  %s9 = inlined_call_operand.hbm [shape: f32[1,128], index: 9, kind: output, shape index: {}]
  %s10 = sld [smem:[#allocation0]]
  $region46: #{tpu_custom_call.1} parent=0
    _
  %s12 = ssub.s32 1, %s10
  %s13 = scalar_select 0, %s12, %s10
  %14 = sst [smem:[#allocation2]] %s8
  $region1: #{tpu_custom_call.1} parent=0
    #allocation3 [shape = 'u8[512]{0}', space=vmem, size = 0x400, scoped, tag = 'output window, operand 0, single buffered']
    #allocation4 [shape = 's32[1]{0}', space=sflag, size = 0x4, scoped, tag = 'scoped memory for tpu_custom_call.1']
    %15 = vsyncpa [#allocation4], 0
    // Predicated region
    $region2: #{tpu_custom_call.1} parent=1 // pred_check
      _
    $region3: #{tpu_custom_call.1} parent=1 // pred_check_branch
      %17 = sbr.rel (0) target = $region5
    $region4: #{tpu_custom_call.1} parent=1 // pred_region
      _
    $region5: #{tpu_custom_call.1} parent=1 // pred_fallthru
      _
    // Predicated region
    $region6: #{tpu_custom_call.1} parent=1 // pred_check
      _
    $region7: #{tpu_custom_call.1} parent=1 // pred_check_branch
      %19 = sbr.rel (0) target = $region9
    $region8: #{tpu_custom_call.1} parent=1 // pred_region
      _
    $region9: #{tpu_custom_call.1} parent=1 // pred_fallthru
      _
    // Predicated region
    $region10: #{tpu_custom_call.1} parent=1 // pred_check
      _
    $region11: #{tpu_custom_call.1} parent=1 // pred_check_branch
      %21 = sbr.rel (0) target = $region13
    $region12: #{tpu_custom_call.1} parent=1 // pred_region
      _
    $region13: #{tpu_custom_call.1} parent=1 // pred_fallthru
      _
    // Predicated region
    $region14: #{tpu_custom_call.1} parent=1 // pred_check
      _
    $region15: #{tpu_custom_call.1} parent=1 // pred_check_branch
      %23 = sbr.rel (0) target = $region17
    $region16: #{tpu_custom_call.1} parent=1 // pred_region
      _
    $region17: #{tpu_custom_call.1} parent=1 // pred_fallthru
      _
    // Predicated region
    $region18: #{tpu_custom_call.1} parent=1 // pred_check
      _
    $region19: #{tpu_custom_call.1} parent=1 // pred_check_branch
      %25 = sbr.rel (0) target = $region21
    $region20: #{tpu_custom_call.1} parent=1 // pred_region
      _
    $region21: #{tpu_custom_call.1} parent=1 // pred_fallthru
      _
    // Predicated region
    $region22: #{tpu_custom_call.1} parent=1 // pred_check
      _
    $region23: #{tpu_custom_call.1} parent=1 // pred_check_branch
      %27 = sbr.rel (0) target = $region25
    $region24: #{tpu_custom_call.1} parent=1 // pred_region
      _
    $region25: #{tpu_custom_call.1} parent=1 // pred_fallthru
      _
    // Predicated region
    $region26: #{tpu_custom_call.1} parent=1 // pred_check
      _
    $region27: #{tpu_custom_call.1} parent=1 // pred_check_branch
      %29 = sbr.rel (0) target = $region29
    $region28: #{tpu_custom_call.1} parent=1 // pred_region
      _
    $region29: #{tpu_custom_call.1} parent=1 // pred_fallthru
      _
    // Predicated region
    $region30: #{tpu_custom_call.1} parent=1 // pred_check
      _
    $region31: #{tpu_custom_call.1} parent=1 // pred_check_branch
      %31 = sbr.rel (0) target = $region33
    $region32: #{tpu_custom_call.1} parent=1 // pred_region
      _
    $region33: #{tpu_custom_call.1} parent=1 // pred_fallthru
      _
    // Predicated region
    $region34: #{tpu_custom_call.1} parent=1 // pred_check
      _
    $region35: #{tpu_custom_call.1} parent=1 // pred_check_branch
      %33 = sbr.rel (0) target = $region37
    $region36: #{tpu_custom_call.1} parent=1 // pred_region
      _
    $region37: #{tpu_custom_call.1} parent=1 // pred_fallthru
      _
    %v35 = vld [vmem:[%s0] sm:$0xf]
    %v36 = vld [vmem:[%s0 + $0x4] sm:$0x1]
    %v37 = vld [vmem:[%s1] sm:$0xf]
    %v38 = vld [vmem:[%s1 + $0x4] sm:$0xf]
    %v39 = vld [vmem:[%s1 + $0x8] sm:$0xf]
    %v40 = vld [vmem:[%s1 + $0xc] sm:$0xf]
    %v41 = vld [vmem:[%s1 + $0x10] sm:$0xf]
    %v42 = vld [vmem:[%s1 + $0x14] sm:$0xf]
    %v43 = vld [vmem:[%s1 + $0x18] sm:$0xf]
    %v44 = vld [vmem:[%s1 + $0x1c] sm:$0xf]
    %v45 = vld [vmem:[%s1 + $0x20] sm:$0xf]
    %v46 = vld [vmem:[%s1 + $0x24] sm:$0xf]
    %v47 = vld [vmem:[%s1 + $0x28] sm:$0xf]
    %v48 = vld [vmem:[%s1 + $0x2c] sm:$0xf]
    %v49 = vld [vmem:[%s1 + $0x30] sm:$0xf]
    %v50 = vld [vmem:[%s1 + $0x34] sm:$0xf]
    %v51 = vld [vmem:[%s1 + $0x38] sm:$0xf]
    %v52 = vld [vmem:[%s1 + $0x3c] sm:$0xf]
    %v53 = vld [vmem:[%s2] sm:$0xff]
    %v54 = vld [vmem:[%s2 + $0x8] sm:$0xff]
    %v55 = vld [vmem:[%s2 + $0x10] sm:$0xff]
    %v56 = vld [vmem:[%s2 + $0x18] sm:$0xff]
    %v57 = vld [vmem:[%s2 + $0x20] sm:$0xff]
    %v58 = vld [vmem:[%s2 + $0x28] sm:$0xff]
    %v59 = vld [vmem:[%s2 + $0x30] sm:$0xff]
    %v60 = vld [vmem:[%s2 + $0x38] sm:$0xff]
    %v61 = vld [vmem:[%s2 + $0x40] sm:$0xff]
    %v62 = vld [vmem:[%s2 + $0x48] sm:$0xff]
    %v63 = vld [vmem:[%s2 + $0x50] sm:$0xff]
    %v64 = vld [vmem:[%s2 + $0x58] sm:$0xff]
    %v65 = vld [vmem:[%s2 + $0x60] sm:$0xff]
    %v66 = vld [vmem:[%s2 + $0x68] sm:$0xff]
    %v67 = vld [vmem:[%s2 + $0x70] sm:$0xff]
    %v68 = vld [vmem:[%s2 + $0x78] sm:$0xff]
    %70 = vset.pattern.permute.xlu0 0
    %71 = vperm.xlu0 %70, %v53
    %v72 = vpop.permute.xlu0 %71
    %75 = vset.pattern.permute.xlu0 0
    %76 = vperm.xlu0 %75, %v54
    %v77 = vpop.permute.xlu0 %76
    %80 = vset.pattern.permute.xlu0 0
    %81 = vperm.xlu0 %80, %v55
    %v82 = vpop.permute.xlu0 %81
    %85 = vset.pattern.permute.xlu0 0
    %86 = vperm.xlu0 %85, %v56
    %v87 = vpop.permute.xlu0 %86
    %90 = vset.pattern.permute.xlu0 0
    %91 = vperm.xlu0 %90, %v57
    %v92 = vpop.permute.xlu0 %91
    %95 = vset.pattern.permute.xlu0 0
    %96 = vperm.xlu0 %95, %v58
    %v97 = vpop.permute.xlu0 %96
    %100 = vset.pattern.permute.xlu0 0
    %101 = vperm.xlu0 %100, %v59
    %v102 = vpop.permute.xlu0 %101
    %105 = vset.pattern.permute.xlu0 0
    %106 = vperm.xlu0 %105, %v60
    %v107 = vpop.permute.xlu0 %106
    %110 = vset.pattern.permute.xlu0 0
    %111 = vperm.xlu0 %110, %v61
    %v112 = vpop.permute.xlu0 %111
    %115 = vset.pattern.permute.xlu0 0
    %116 = vperm.xlu0 %115, %v62
    %v117 = vpop.permute.xlu0 %116
    %120 = vset.pattern.permute.xlu0 0
    %121 = vperm.xlu0 %120, %v63
    %v122 = vpop.permute.xlu0 %121
    %125 = vset.pattern.permute.xlu0 0
    %126 = vperm.xlu0 %125, %v64
    %v127 = vpop.permute.xlu0 %126
    %130 = vset.pattern.permute.xlu0 0
    %131 = vperm.xlu0 %130, %v65
    %v132 = vpop.permute.xlu0 %131
    %135 = vset.pattern.permute.xlu0 0
    %136 = vperm.xlu0 %135, %v66
    %v137 = vpop.permute.xlu0 %136
    %140 = vset.pattern.permute.xlu0 0
    %141 = vperm.xlu0 %140, %v67
    %v142 = vpop.permute.xlu0 %141
    %145 = vset.pattern.permute.xlu0 0
    %146 = vperm.xlu0 %145, %v68
    %v147 = vpop.permute.xlu0 %146
    %v165 = vunpack.c.l.b16 %v37
    %v166 = vunpack.c.l.b16 %v38
    %v167 = vunpack.c.l.b16 %v39
    %v168 = vunpack.c.l.b16 %v40
    %v169 = vunpack.c.l.b16 %v41
    %v170 = vunpack.c.l.b16 %v42
    %v171 = vunpack.c.l.b16 %v43
    %v172 = vunpack.c.l.b16 %v44
    %v173 = vunpack.c.l.b16 %v45
    %v174 = vunpack.c.l.b16 %v46
    %v175 = vunpack.c.l.b16 %v47
    %v176 = vunpack.c.l.b16 %v48
    %v177 = vunpack.c.l.b16 %v49
    %v178 = vunpack.c.l.b16 %v50
    %v179 = vunpack.c.l.b16 %v51
    %v180 = vunpack.c.l.b16 %v52
    %v181 = vpack.c.b16 %v166, %v165
    %v182 = vpack.c.b16 %v168, %v167
    %v183 = vpack.c.b16 %v170, %v169
    %v184 = vpack.c.b16 %v172, %v171
    %v185 = vpack.c.b16 %v174, %v173
    %v186 = vpack.c.b16 %v176, %v175
    %v187 = vpack.c.b16 %v178, %v177
    %v188 = vpack.c.b16 %v180, %v179
    %v191 = vunpack.c.l.b16 %v35
    %v192 = vunpack.c.l.b16 %v36
    %v193 = vpack.c.b16 %v192, %v191
    %vm194 = vcmask 80896
    %v196 = vsel %vm194, %v181, 0
    %v199 = vsel %vm194, %v182, 0
    %v202 = vsel %vm194, %v183, 0
    %v205 = vsel %vm194, %v184, 0
    %v208 = vsel %vm194, %v185, 0
    %v211 = vsel %vm194, %v186, 0
    %v214 = vsel %vm194, %v187, 0
    %v217 = vsel %vm194, %v188, 0
    %vm219 = vcmask 1044480
    %v221 = vsel %vm219, %v193, 0
    %223 = vmatprep.subr.bf16.mxu0 0
    %224 = vmatpush1.bf16.msra.mxu0 %v221
    %225 = vmatprep.subr.bf16.mxu0 0
    %226 = vmatpush1.bf16.msra.mxu0 0
    %227 = vmatprep.subr.bf16.mxu0 0
    %228 = vmatpush1.bf16.msra.mxu0 0
    %229 = vmatprep.subr.bf16.mxu0 0
    %230 = vmatpush1.bf16.msra.mxu0 0
    %231 = vmatprep.subr.bf16.mxu0 0
    %232 = vmatpush1.bf16.msra.mxu0 0
    %233 = vmatprep.subr.bf16.mxu0 0
    %234 = vmatpush1.bf16.msra.mxu0 0
    %235 = vmatprep.subr.bf16.mxu0 0
    %236 = vmatpush1.bf16.msra.mxu0 0
    %237 = vmatprep.subr.bf16.mxu0 0
    %238 = vmatpush1.bf16.msra.mxu0 0
    %239 = vmatprep.subr.bf16.mxu0 0
    %240 = vmatpush1.bf16.msra.mxu0 0
    %241 = vmatprep.subr.bf16.mxu0 0
    %242 = vmatpush1.bf16.msra.mxu0 0
    %243 = vmatprep.subr.bf16.mxu0 0
    %244 = vmatpush1.bf16.msra.mxu0 0
    %245 = vmatprep.subr.bf16.mxu0 0
    %246 = vmatpush1.bf16.msra.mxu0 0
    %247 = vmatprep.subr.bf16.mxu0 0
    %248 = vmatpush1.bf16.msra.mxu0 0
    %249 = vmatprep.subr.bf16.mxu0 0
    %250 = vmatpush1.bf16.msra.mxu0 0
    %251 = vmatprep.subr.bf16.mxu0 0
    %252 = vmatpush1.bf16.msra.mxu0 0
    %253 = vmatprep.subr.bf16.mxu0 0
    %254 = vmatpush1.bf16.msra.mxu0 0
    %255 = vmatprep.mubr.bf16.mxu0 0
    %256 = vmatmul.mubr.bf16.gmra.mrb[0].mxu0 %v196
    %v257 = vpop.f32.mrb[0].mxu0
    %v258 = vadd.f32 %v72, %v257
    %v259 = vpop.f32.mrb[0].mxu0
    %v260 = vpop.f32.mrb[0].mxu0
    %v261 = vadd.f32 %v77, %v260
    %v262 = vpop.f32.mrb[0].mxu0
    %263 = vmatprep.mubr.bf16.mxu0 0
    %264 = vmatmul.mubr.bf16.gmra.mrb[0].mxu0 %v199
    %v265 = vpop.f32.mrb[0].mxu0
    %v266 = vadd.f32 %v82, %v265
    %v267 = vpop.f32.mrb[0].mxu0
    %v268 = vpop.f32.mrb[0].mxu0
    %v269 = vadd.f32 %v87, %v268
    %v270 = vpop.f32.mrb[0].mxu0
    %271 = vmatprep.mubr.bf16.mxu0 0
    %272 = vmatmul.mubr.bf16.gmra.mrb[0].mxu0 %v202
    %v273 = vpop.f32.mrb[0].mxu0
    %v274 = vadd.f32 %v92, %v273
    %v275 = vpop.f32.mrb[0].mxu0
    %v276 = vpop.f32.mrb[0].mxu0
    %v277 = vadd.f32 %v97, %v276
    %v278 = vpop.f32.mrb[0].mxu0
    %279 = vmatprep.mubr.bf16.mxu0 0
    %280 = vmatmul.mubr.bf16.gmra.mrb[0].mxu0 %v205
    %v281 = vpop.f32.mrb[0].mxu0
    %v282 = vadd.f32 %v102, %v281
    %v283 = vpop.f32.mrb[0].mxu0
    %v284 = vpop.f32.mrb[0].mxu0
    %v285 = vadd.f32 %v107, %v284
    %v286 = vpop.f32.mrb[0].mxu0
    %287 = vmatprep.mubr.bf16.mxu0 0
    %288 = vmatmul.mubr.bf16.gmra.mrb[0].mxu0 %v208
    %v289 = vpop.f32.mrb[0].mxu0
    %v290 = vadd.f32 %v112, %v289
    %v291 = vpop.f32.mrb[0].mxu0
    %v292 = vpop.f32.mrb[0].mxu0
    %v293 = vadd.f32 %v117, %v292
    %v294 = vpop.f32.mrb[0].mxu0
    %295 = vmatprep.mubr.bf16.mxu0 0
    %296 = vmatmul.mubr.bf16.gmra.mrb[0].mxu0 %v211
    %v297 = vpop.f32.mrb[0].mxu0
    %v298 = vadd.f32 %v122, %v297
    %v299 = vpop.f32.mrb[0].mxu0
    %v300 = vpop.f32.mrb[0].mxu0
    %v301 = vadd.f32 %v127, %v300
    %v302 = vpop.f32.mrb[0].mxu0
    %303 = vmatprep.mubr.bf16.mxu0 0
    %304 = vmatmul.mubr.bf16.gmra.mrb[0].mxu0 %v214
    %v305 = vpop.f32.mrb[0].mxu0
    %v306 = vadd.f32 %v132, %v305
    %v307 = vpop.f32.mrb[0].mxu0
    %v308 = vpop.f32.mrb[0].mxu0
    %v309 = vadd.f32 %v137, %v308
    %v310 = vpop.f32.mrb[0].mxu0
    %311 = vmatprep.mubr.bf16.mxu0 0
    %312 = vmatmul.mubr.bf16.gmra.mrb[0].mxu0 %v217
    %v313 = vpop.f32.mrb[0].mxu0
    %v314 = vadd.f32 %v142, %v313
    %v315 = vpop.f32.mrb[0].mxu0
    %v316 = vpop.f32.mrb[0].mxu0
    %v317 = vadd.f32 %v147, %v316
    %v318 = vpop.f32.mrb[0].mxu0
    %319 = vdwg.mxu0
    %v320 = vmax.f32 %v258, 0.0
    %v321 = vmax.f32 %v261, 0.0
    %v322 = vmax.f32 %v266, 0.0
    %v323 = vmax.f32 %v269, 0.0
    %v324 = vmax.f32 %v274, 0.0
    %v325 = vmax.f32 %v277, 0.0
    %v326 = vmax.f32 %v282, 0.0
    %v327 = vmax.f32 %v285, 0.0
    %v328 = vmax.f32 %v290, 0.0
    %v329 = vmax.f32 %v293, 0.0
    %v330 = vmax.f32 %v298, 0.0
    %v331 = vmax.f32 %v301, 0.0
    %v332 = vmax.f32 %v306, 0.0
    %v333 = vmax.f32 %v309, 0.0
    %v334 = vmax.f32 %v314, 0.0
    %v335 = vmax.f32 %v317, 0.0
    %v336 = vpack.c.bf16 %v321, %v320
    %v337 = vpack.c.bf16 %v323, %v322
    %v338 = vpack.c.bf16 %v325, %v324
    %v339 = vpack.c.bf16 %v327, %v326
    %v340 = vpack.c.bf16 %v329, %v328
    %v341 = vpack.c.bf16 %v331, %v330
    %v342 = vpack.c.bf16 %v333, %v332
    %v343 = vpack.c.bf16 %v335, %v334
    %v344 = vld [vmem:[%s3] sm:$0xf]
    %v345 = vld [vmem:[%s3 + $0x4] sm:$0xf]
    %v346 = vld [vmem:[%s3 + $0x8] sm:$0xf]
    %v347 = vld [vmem:[%s3 + $0xc] sm:$0xf]
    %v348 = vld [vmem:[%s3 + $0x10] sm:$0xf]
    %v349 = vld [vmem:[%s3 + $0x14] sm:$0xf]
    %v350 = vld [vmem:[%s3 + $0x18] sm:$0xf]
    %v351 = vld [vmem:[%s3 + $0x1c] sm:$0xf]
    %v352 = vld [vmem:[%s4] sm:$0xff]
    %v353 = vld [vmem:[%s4 + $0x8] sm:$0xff]
    %v354 = vld [vmem:[%s4 + $0x10] sm:$0xff]
    %v355 = vld [vmem:[%s4 + $0x18] sm:$0xff]
    %v356 = vld [vmem:[%s4 + $0x20] sm:$0xff]
    %v357 = vld [vmem:[%s4 + $0x28] sm:$0xff]
    %v358 = vld [vmem:[%s4 + $0x30] sm:$0xff]
    %v359 = vld [vmem:[%s4 + $0x38] sm:$0xff]
    %361 = vset.pattern.permute.xlu0 0
    %362 = vperm.xlu0 %361, %v352
    %v363 = vpop.permute.xlu0 %362
    %366 = vset.pattern.permute.xlu0 0
    %367 = vperm.xlu0 %366, %v353
    %v368 = vpop.permute.xlu0 %367
    %371 = vset.pattern.permute.xlu0 0
    %372 = vperm.xlu0 %371, %v354
    %v373 = vpop.permute.xlu0 %372
    %376 = vset.pattern.permute.xlu0 0
    %377 = vperm.xlu0 %376, %v355
    %v378 = vpop.permute.xlu0 %377
    %381 = vset.pattern.permute.xlu0 0
    %382 = vperm.xlu0 %381, %v356
    %v383 = vpop.permute.xlu0 %382
    %386 = vset.pattern.permute.xlu0 0
    %387 = vperm.xlu0 %386, %v357
    %v388 = vpop.permute.xlu0 %387
    %391 = vset.pattern.permute.xlu0 0
    %392 = vperm.xlu0 %391, %v358
    %v393 = vpop.permute.xlu0 %392
    %396 = vset.pattern.permute.xlu0 0
    %397 = vperm.xlu0 %396, %v359
    %v398 = vpop.permute.xlu0 %397
    %v408 = vunpack.c.l.b16 %v344
    %v409 = vunpack.c.l.b16 %v345
    %v410 = vunpack.c.l.b16 %v346
    %v411 = vunpack.c.l.b16 %v347
    %v412 = vunpack.c.l.b16 %v348
    %v413 = vunpack.c.l.b16 %v349
    %v414 = vunpack.c.l.b16 %v350
    %v415 = vunpack.c.l.b16 %v351
    %v416 = vpack.c.b16 %v409, %v408
    %v417 = vpack.c.b16 %v411, %v410
    %v418 = vpack.c.b16 %v413, %v412
    %v419 = vpack.c.b16 %v415, %v414
    %424 = vmatprep.subr.bf16.mxu0 0
    %425 = vmatpush1.bf16.msra.mxu0 %v336
    %426 = vmatprep.subr.bf16.mxu0 0
    %427 = vmatpush1.bf16.msra.mxu0 %v337
    %428 = vmatprep.subr.bf16.mxu0 0
    %429 = vmatpush1.bf16.msra.mxu0 %v338
    %430 = vmatprep.subr.bf16.mxu0 0
    %431 = vmatpush1.bf16.msra.mxu0 %v339
    %432 = vmatprep.subr.bf16.mxu0 0
    %433 = vmatpush1.bf16.msra.mxu0 %v340
    %434 = vmatprep.subr.bf16.mxu0 0
    %435 = vmatpush1.bf16.msra.mxu0 %v341
    %436 = vmatprep.subr.bf16.mxu0 0
    %437 = vmatpush1.bf16.msra.mxu0 %v342
    %438 = vmatprep.subr.bf16.mxu0 0
    %439 = vmatpush1.bf16.msra.mxu0 %v343
    %440 = vmatprep.subr.bf16.mxu0 0
    %441 = vmatpush1.bf16.msra.mxu0 0
    %442 = vmatprep.subr.bf16.mxu0 0
    %443 = vmatpush1.bf16.msra.mxu0 0
    %444 = vmatprep.subr.bf16.mxu0 0
    %445 = vmatpush1.bf16.msra.mxu0 0
    %446 = vmatprep.subr.bf16.mxu0 0
    %447 = vmatpush1.bf16.msra.mxu0 0
    %448 = vmatprep.subr.bf16.mxu0 0
    %449 = vmatpush1.bf16.msra.mxu0 0
    %450 = vmatprep.subr.bf16.mxu0 0
    %451 = vmatpush1.bf16.msra.mxu0 0
    %452 = vmatprep.subr.bf16.mxu0 0
    %453 = vmatpush1.bf16.msra.mxu0 0
    %454 = vmatprep.subr.bf16.mxu0 0
    %455 = vmatpush1.bf16.msra.mxu0 0
    %456 = vmatprep.mubr.bf16.mxu0 0
    %457 = vmatmul.mubr.bf16.gmra.mrb[0].mxu0 %v416
    %v458 = vpop.f32.mrb[0].mxu0
    %v459 = vadd.f32 %v363, %v458
    %v460 = vpop.f32.mrb[0].mxu0
    %v461 = vpop.f32.mrb[0].mxu0
    %v462 = vadd.f32 %v368, %v461
    %v463 = vpop.f32.mrb[0].mxu0
    %464 = vmatprep.mubr.bf16.mxu0 0
    %465 = vmatmul.mubr.bf16.gmra.mrb[0].mxu0 %v417
    %v466 = vpop.f32.mrb[0].mxu0
    %v467 = vadd.f32 %v373, %v466
    %v468 = vpop.f32.mrb[0].mxu0
    %v469 = vpop.f32.mrb[0].mxu0
    %v470 = vadd.f32 %v378, %v469
    %v471 = vpop.f32.mrb[0].mxu0
    %472 = vmatprep.mubr.bf16.mxu0 0
    %473 = vmatmul.mubr.bf16.gmra.mrb[0].mxu0 %v418
    %v474 = vpop.f32.mrb[0].mxu0
    %v475 = vadd.f32 %v383, %v474
    %v476 = vpop.f32.mrb[0].mxu0
    %v477 = vpop.f32.mrb[0].mxu0
    %v478 = vadd.f32 %v388, %v477
    %v479 = vpop.f32.mrb[0].mxu0
    %480 = vmatprep.mubr.bf16.mxu0 0
    %481 = vmatmul.mubr.bf16.gmra.mrb[0].mxu0 %v419
    %v482 = vpop.f32.mrb[0].mxu0
    %v483 = vadd.f32 %v393, %v482
    %v484 = vpop.f32.mrb[0].mxu0
    %v485 = vpop.f32.mrb[0].mxu0
    %v486 = vadd.f32 %v398, %v485
    %v487 = vpop.f32.mrb[0].mxu0
    %488 = vdwg.mxu0
    %v489 = vmax.f32 %v459, 0.0
    %v490 = vmax.f32 %v462, 0.0
    %v491 = vmax.f32 %v467, 0.0
    %v492 = vmax.f32 %v470, 0.0
    %v493 = vmax.f32 %v475, 0.0
    %v494 = vmax.f32 %v478, 0.0
    %v495 = vmax.f32 %v483, 0.0
    %v496 = vmax.f32 %v486, 0.0
    %v497 = vpack.c.bf16 %v490, %v489
    %v498 = vpack.c.bf16 %v492, %v491
    %v499 = vpack.c.bf16 %v494, %v493
    %v500 = vpack.c.bf16 %v496, %v495
    %v501 = vld [vmem:[%s5] sm:$0xf]
    %v502 = vld [vmem:[%s5 + $0x4] sm:$0xf]
    %v503 = vld [vmem:[%s5 + $0x8] sm:$0xf]
    %v504 = vld [vmem:[%s5 + $0xc] sm:$0xf]
    %v505 = vld [vmem:[%s6] sm:$0xff]
    %v506 = vld [vmem:[%s6 + $0x8] sm:$0xff]
    %v507 = vld [vmem:[%s6 + $0x10] sm:$0xff]
    %v508 = vld [vmem:[%s6 + $0x18] sm:$0xff]
    %510 = vset.pattern.permute.xlu0 0
    %511 = vperm.xlu0 %510, %v505
    %v512 = vpop.permute.xlu0 %511
    %515 = vset.pattern.permute.xlu0 0
    %516 = vperm.xlu0 %515, %v506
    %v517 = vpop.permute.xlu0 %516
    %520 = vset.pattern.permute.xlu0 0
    %521 = vperm.xlu0 %520, %v507
    %v522 = vpop.permute.xlu0 %521
    %525 = vset.pattern.permute.xlu0 0
    %526 = vperm.xlu0 %525, %v508
    %v527 = vpop.permute.xlu0 %526
    %v533 = vunpack.c.l.b16 %v501
    %v534 = vunpack.c.l.b16 %v502
    %v535 = vunpack.c.l.b16 %v503
    %v536 = vunpack.c.l.b16 %v504
    %v537 = vpack.c.b16 %v534, %v533
    %v538 = vpack.c.b16 %v536, %v535
    %vm539 = vcmask 523264
    %v541 = vsel %vm539, %v537, 0
    %v544 = vsel %vm539, %v538, 0
    %546 = vmatprep.subr.bf16.mxu0 0
    %547 = vmatpush1.bf16.msra.mxu0 %v497
    %548 = vmatprep.subr.bf16.mxu0 0
    %549 = vmatpush1.bf16.msra.mxu0 %v498
    %550 = vmatprep.subr.bf16.mxu0 0
    %551 = vmatpush1.bf16.msra.mxu0 %v499
    %552 = vmatprep.subr.bf16.mxu0 0
    %553 = vmatpush1.bf16.msra.mxu0 %v500
    %554 = vmatprep.subr.bf16.mxu0 0
    %555 = vmatpush1.bf16.msra.mxu0 0
    %556 = vmatprep.subr.bf16.mxu0 0
    %557 = vmatpush1.bf16.msra.mxu0 0
    %558 = vmatprep.subr.bf16.mxu0 0
    %559 = vmatpush1.bf16.msra.mxu0 0
    %560 = vmatprep.subr.bf16.mxu0 0
    %561 = vmatpush1.bf16.msra.mxu0 0
    %562 = vmatprep.subr.bf16.mxu0 0
    %563 = vmatpush1.bf16.msra.mxu0 0
    %564 = vmatprep.subr.bf16.mxu0 0
    %565 = vmatpush1.bf16.msra.mxu0 0
    %566 = vmatprep.subr.bf16.mxu0 0
    %567 = vmatpush1.bf16.msra.mxu0 0
    %568 = vmatprep.subr.bf16.mxu0 0
    %569 = vmatpush1.bf16.msra.mxu0 0
    %570 = vmatprep.subr.bf16.mxu0 0
    %571 = vmatpush1.bf16.msra.mxu0 0
    %572 = vmatprep.subr.bf16.mxu0 0
    %573 = vmatpush1.bf16.msra.mxu0 0
    %574 = vmatprep.subr.bf16.mxu0 0
    %575 = vmatpush1.bf16.msra.mxu0 0
    %576 = vmatprep.subr.bf16.mxu0 0
    %577 = vmatpush1.bf16.msra.mxu0 0
    %578 = vmatprep.mubr.bf16.mxu0 0
    %579 = vmatmul.mubr.bf16.gmra.mrb[0].mxu0 %v541
    %v580 = vpop.f32.mrb[0].mxu0
    %v581 = vadd.f32 %v512, %v580
    %v582 = vpop.f32.mrb[0].mxu0
    %v583 = vpop.f32.mrb[0].mxu0
    %v584 = vadd.f32 %v517, %v583
    %v585 = vpop.f32.mrb[0].mxu0
    %586 = vmatprep.mubr.bf16.mxu0 0
    %587 = vmatmul.mubr.bf16.gmra.mrb[0].mxu0 %v544
    %v588 = vpop.f32.mrb[0].mxu0
    %v589 = vadd.f32 %v522, %v588
    %v590 = vpop.f32.mrb[0].mxu0
    %v591 = vpop.f32.mrb[0].mxu0
    %v592 = vadd.f32 %v527, %v591
    %v593 = vpop.f32.mrb[0].mxu0
    %594 = vdwg.mxu0
    %v595 = vmax.f32 %v581, 0.0
    %v596 = vmax.f32 %v584, 0.0
    %v597 = vmax.f32 %v589, 0.0
    %v598 = vmax.f32 %v592, 0.0
    %v599 = vld [vmem:[%s7] sm:$0xff]
    %v600 = vld [vmem:[%s7 + $0x8] sm:$0xff]
    %v601 = vld [vmem:[%s7 + $0x10] sm:$0xff]
    %v602 = vld [vmem:[%s7 + $0x18] sm:$0xff]
    %604 = vset.pattern.permute.xlu0 0
    %605 = vperm.xlu0 %604, %v599
    %v606 = vpop.permute.xlu0 %605
    %609 = vset.pattern.permute.xlu0 0
    %610 = vperm.xlu0 %609, %v600
    %v611 = vpop.permute.xlu0 %610
    %614 = vset.pattern.permute.xlu0 0
    %615 = vperm.xlu0 %614, %v601
    %v616 = vpop.permute.xlu0 %615
    %619 = vset.pattern.permute.xlu0 0
    %620 = vperm.xlu0 %619, %v602
    %v621 = vpop.permute.xlu0 %620
    %v623 = vmul.f32 %v595, %v606
    %v624 = vmul.f32 %v596, %v611
    %v625 = vmul.f32 %v597, %v616
    %v626 = vmul.f32 %v598, %v621
    %v627 = vadd.f32 %v623, %v624
    %v628 = vadd.f32 %v627, %v625
    %v629 = vadd.f32 %v628, %v626
    %v630 = vrot.slane %v629, 4
    %v631 = vadd.f32 %v629, %v630
    %v632 = vrot.slane %v631, 2
    %v633 = vadd.f32 %v631, %v632
    %v634 = vrot.slane %v633, 1
    %v635 = vadd.f32 %v633, %v634
    %s636 = sld [smem:[#allocation2]]
    %v637 = vstv %s636
    %v638 = vadd.f32 %v635, %v637
    %639 = vst [vmem:[#allocation3] sm:$0x1] %v638
    // Predicated region
    $region38: #{tpu_custom_call.1} parent=1 // pred_check
      _
    $region39: #{tpu_custom_call.1} parent=1 // pred_check_branch
      %641 = sbr.rel (0) target = $region41
    $region40: #{tpu_custom_call.1} parent=1 // pred_region
      %s643 = ssub.s32 16, 16
      %644 = vsyncadd [#allocation4], %s643
      %s646 = sshll.u32 [#allocation3], 4
      %s647 = int_to_ptr.vmem [resolvable:$true] %s646
      %649 = dma.vmem_to_hbm [thread:$0]  %s647, 16, %s9, [#allocation4]
    $region41: #{tpu_custom_call.1} parent=1 // pred_fallthru
      _
    // Predicated region
    $region42: #{tpu_custom_call.1} parent=1 // pred_check
      _
    $region43: #{tpu_custom_call.1} parent=1 // pred_check_branch
      %651 = sbr.rel (0) target = $region45
    $region44: #{tpu_custom_call.1} parent=1 // pred_region
      %652 = dma.done [#allocation4], 16
    $region45: #{tpu_custom_call.1} parent=1 // pred_fallthru
      _
    %653 = vsyncpa [#allocation4], 1

</llo_original>
